<compile_context>
chip_gen: v5e
topology: v5e:2x2
jax: 0.10.0
libtpu: 0.0.40
codegen_flags: <defaults>
</compile_context>

<pallas_src>
import functools
import math

import jax
import jax.numpy as jnp
from jax.experimental import pallas as pl
from jax.experimental.pallas import tpu as pltpu


def _pos_enc_kernel(seed_ref, x_ref, pe_ref, o_ref, *, p, train):
    # x_ref / pe_ref / o_ref: (TS, TL) VMEM tiles of the lane-collapsed
    # (seq, batch*d_model) layout -> lane-dense loads and stores.
    y = x_ref[...] + pe_ref[...]

    if train and p > 0.0:
        ts, tl = x_ref.shape
        # Global element index: unique per element AND per grid tile, so every
        # tile gets an independent dropout mask.  The row stride uses the
        # padded lane extent so indices stay unique even when the last lane
        # tile is ragged.  int32 wraps past 2**31 elements -> dropout bits
        # repeat beyond that (fine for any realistic activation tensor).
        row0 = pl.program_id(0) * ts
        col0 = pl.program_id(1) * tl
        lane_extent = pl.num_programs(1) * tl
        r = jax.lax.broadcasted_iota(jnp.int32, (ts, tl), 0) + row0
        c = jax.lax.broadcasted_iota(jnp.int32, (ts, tl), 1) + col0
        idx = (r * lane_extent + c).astype(jnp.uint32)

        # xxhash32-style avalanche of (index, seed) -> uniform uint32 bits.
        # Pure VPU integer ops: portable (interpret mode + TPU), no HBM cost.
        h = idx * jnp.uint32(0x9E3779B1) + seed_ref[0].astype(jnp.uint32)
        h = h ^ (h >> jnp.uint32(15))
        h = h * jnp.uint32(0x85EBCA77)
        h = h ^ (h >> jnp.uint32(13))
        h = h * jnp.uint32(0xC2B2AE3D)
        h = h ^ (h >> jnp.uint32(16))

        # Integer-domain keep test: P(h < thr) = p  =>  keep with prob 1 - p.
        thr = jnp.uint32(min(int(round(p * 2.0 ** 32)), 2 ** 32 - 1))
        keep = h >= thr
        # Inverted-dropout scale in f32 (avoids bf16 1/(1-p) rounding bias);
        # single cast on the way out.
        scale = jnp.float32(1.0 / (1.0 - p))
        y = jnp.where(keep, y.astype(jnp.float32) * scale, jnp.float32(0.0))

    o_ref[...] = y.astype(o_ref.dtype)


def make_positional_encoding_table(d_model: int, max_len: int) -> jnp.ndarray:
    """Deterministic pe buffer, identical to the PyTorch __init__."""
    position = jnp.arange(max_len, dtype=jnp.float32)[:, None]          # (L, 1)
    div_term = jnp.exp(
        jnp.arange(0, d_model, 2, dtype=jnp.float32)
        * (-math.log(10000.0) / d_model)
    )                                                                    # (D/2,)
    pe = jnp.zeros((max_len, 1, d_model), dtype=jnp.float32)
    pe = pe.at[:, 0, 0::2].set(jnp.sin(position * div_term))
    pe = pe.at[:, 0, 1::2].set(jnp.cos(position * div_term))
    return pe


def prepare_pe_flat(pe: jnp.ndarray, batch: int, dtype) -> jnp.ndarray:
    """Pre-broadcast + cast the (max_len, 1, D) table to a lane-dense
    (max_len, batch*D) slab.  Do this once, outside the per-step hot path."""
    L, one, D = pe.shape
    assert one == 1
    return jnp.broadcast_to(pe.astype(dtype), (L, batch, D)).reshape(L, batch * D)


def _choose_tiles(S, BD, itemsize, *, vmem_budget_bytes=12 << 20, max_lanes=2048):
    """Pick (row_tile, lane_tile) for the (S, B*D) slab.

    Lane tile: the full extent when small (legal even if not a 128-multiple),
    otherwise a 128-multiple chunk -- this also bounds per-tile VMEM for huge
    batch*d_model, which matters on v7x's 64 MiB physical VMEM.
    Row tile: sized so x + pe + out, double-buffered, stay ~12 MiB total
    (comfortably under the 32 MiB scoped-VMEM limit on all generations while
    keeping each DMA in the 1-4 MiB roofline sweet spot).
    """
    tl = BD if BD <= max_lanes else max_lanes
    per_row_bytes = 3 * 2 * tl * itemsize          # 3 arrays, double-buffered
    ts = max(1, vmem_budget_bytes // per_row_bytes)
    ts = min(ts, S)
    # Keep >= 2 grid steps when possible: shards across v7x's 2 TensorCores
    # and gives the pipeline more than one stage.
    if ts >= S and pl.cdiv(BD, tl) < 2 and S > 8:
        ts = pl.cdiv(S, 2)
    if ts < S:
        ts = max(8, (ts // 8) * 8)                 # sublane multiple
    else:
        ts = S                                     # full extent always legal
    return int(ts), int(tl)


def positional_encoding_forward(x, pe, *, dropout_p: float, train: bool,
                                seed: int = 0, block_rows: int | None = None,
                                block_lanes: int | None = None):
    """x: (S, B, D).  pe: raw (max_len, 1, D) table OR a pre-flattened
    (max_len, B*D) slab from prepare_pe_flat (preferred: keeps the
    broadcast/cast out of the per-call hot path).  Returns dropout(x + pe[:S]).
    """
    S, B, D = x.shape
    BD = B * D

    if pe.ndim == 3:
        pe_flat = prepare_pe_flat(pe, B, x.dtype)   # convenience path
    else:
        pe_flat = pe
    assert pe_flat.ndim == 2 and pe_flat.shape[1] == BD and pe_flat.shape[0] >= S
    assert pe_flat.dtype == x.dtype

    x2 = x.reshape(S, BD)                           # free row-major view

    ts, tl = _choose_tiles(S, BD, x.dtype.itemsize)
    if block_rows is not None:                      # legalized user override
        ts = min(int(block_rows), S)
        if ts < S:
            ts = max(8, (ts // 8) * 8)
    if block_lanes is not None:
        tl = min(int(block_lanes), BD)
        if tl < BD:
            tl = (tl // 128) * 128
            if tl == 0:
                tl = BD
    grid = (pl.cdiv(S, ts), pl.cdiv(BD, tl))

    kernel = functools.partial(_pos_enc_kernel, p=float(dropout_p),
                               train=bool(train))
    seed_arr = jnp.asarray([seed], dtype=jnp.int32)

    itemsize = x.dtype.itemsize
    cost = pl.CostEstimate(
        flops=(2 if (train and dropout_p > 0.0) else 1) * S * BD,
        transcendentals=0,
        bytes_accessed=3 * S * BD * itemsize,       # read x, read pe, write out
    )

    out2 = pl.pallas_call(
        kernel,
        out_shape=jax.ShapeDtypeStruct((S, BD), x.dtype),
        grid_spec=pltpu.PrefetchScalarGridSpec(
            num_scalar_prefetch=1,                  # seed lands in SMEM
            grid=grid,
            in_specs=[
                pl.BlockSpec((ts, tl), lambda s, l, _seed: (s, l)),   # x
                pl.BlockSpec((ts, tl), lambda s, l, _seed: (s, l)),   # pe
            ],
            out_specs=pl.BlockSpec((ts, tl), lambda s, l, _seed: (s, l)),
        ),
        # Inputs are (seed, x, pe) -> x is operand 1; alias it with the output
        # (same shape/dtype) to cut peak HBM footprint.
        input_output_aliases={1: 0},
        cost_estimate=cost,
        compiler_params=pltpu.CompilerParams(
            # Elementwise over independent tiles: shard across both v7x TCs.
            dimension_semantics=("parallel", "parallel"),
            vmem_limit_bytes=32 * 1024 * 1024,      # safe on v5e/v6e/v7x
        ),
    )(seed_arr, x2, pe_flat)

    return out2.reshape(S, B, D)


if __name__ == "__main__":
    d_model = 32
    max_len = 128
    dropout_p = 0.1
    seq, batch = 64, 2     # small, but exercises a multi-step 2-D grid

    key = jax.random.PRNGKey(0)
    x = jax.random.normal(key, (seq, batch, d_model), dtype=jnp.float32)
    pe = make_positional_encoding_table(d_model, max_len)
    pe_flat = prepare_pe_flat(pe, batch, x.dtype)   # hoisted out of hot path
    ref = x + pe[:seq]

    # Eval mode (dropout = identity), manual tile size: exact match.
    out_eval = jax.block_until_ready(
        positional_encoding_forward(x, pe_flat, dropout_p=dropout_p,
                                    train=False, block_rows=16))
    assert out_eval.shape == (seq, batch, d_model)
    assert jnp.allclose(out_eval, ref, atol=1e-6), "eval-mode mismatch (tiled)"

    # Eval mode with auto-chosen tiles (>= 2 grid steps along S).
    out_eval2 = jax.block_until_ready(
        positional_encoding_forward(x, pe_flat, dropout_p=dropout_p,
                                    train=False))
    assert jnp.allclose(out_eval2, ref, atol=1e-6), "eval-mode mismatch (auto)"

    # Train mode: inverted dropout.  Kept entries equal ref / (1 - p);
    # dropped fraction should be in the neighbourhood of p.
    out_train = jax.block_until_ready(
        positional_encoding_forward(x, pe_flat, dropout_p=dropout_p,
                                    train=True, seed=123, block_rows=16))
    assert out_train.shape == (seq, batch, d_model)
    kept = out_train != 0
    scaled_ref = ref / (1.0 - dropout_p)
    kept_err = jnp.where(kept, jnp.abs(out_train - scaled_ref), 0.0)
    assert float(jnp.max(kept_err)) < 1e-5, "kept values not scaled correctly"
    drop_frac = 1.0 - float(jnp.mean(kept.astype(jnp.float32)))
    assert 0.03 <= drop_frac <= 0.20, f"drop fraction {drop_frac} far from p"

    print("KERNEL_OK")
</pallas_src>

<mosaic_0001>
module attributes {stable_mosaic.version = 11 : i64} {
  func.func @_pos_enc_kernel(%arg0: i32, %arg1: i32, %arg2: memref<1xi32, #tpu.memory_space<smem>>, %arg3: memref<16x64xf32, #tpu.memory_space<vmem>>, %arg4: memref<16x64xf32, #tpu.memory_space<vmem>>, %arg5: memref<16x64xf32, #tpu.memory_space<vmem>>) attributes {dimension_semantics = [#tpu.dimension_semantics<parallel>, #tpu.dimension_semantics<parallel>], iteration_bounds = array<i64: 4, 1>, scalar_prefetch = 1 : i64, scratch_operands = 0 : i64, tpu.core_type = #tpu.core_type<tc>, window_params = [{transform_indices = @transform_0, window_bounds = array<i64: 16, 64>}, {transform_indices = @transform_1, window_bounds = array<i64: 16, 64>}, {transform_indices = @transform_2, window_bounds = array<i64: 16, 64>}]} {
    %c0 = arith.constant 0 : index
    %c0_0 = arith.constant 0 : index
    %0 = vector.load %arg3[%c0, %c0_0] : memref<16x64xf32, #tpu.memory_space<vmem>>, vector<16x64xf32>
    %c0_1 = arith.constant 0 : index
    %c0_2 = arith.constant 0 : index
    %1 = vector.load %arg4[%c0_1, %c0_2] : memref<16x64xf32, #tpu.memory_space<vmem>>, vector<16x64xf32>
    %2 = arith.addf %0, %1 : vector<16x64xf32>
    %c0_3 = arith.constant 0 : index
    %c0_4 = arith.constant 0 : index
    %3 = vector.load %arg5[%c0_3, %c0_4] : memref<16x64xf32, #tpu.memory_space<vmem>>, vector<16x64xf32>
    tpu.vector_store %arg5[%c0_3, %c0_4], %2 {strides = array<i32>} : memref<16x64xf32, #tpu.memory_space<vmem>>, vector<16x64xf32>,
    return
  }
  func.func @transform_0(%arg0: i32, %arg1: i32, %arg2: memref<1xi32, #tpu.memory_space<smem>>) -> (i32, i32) {
    %c0_i32 = arith.constant 0 : i32
    return %arg0, %arg1 : i32, i32
  }
  func.func @transform_1(%arg0: i32, %arg1: i32, %arg2: memref<1xi32, #tpu.memory_space<smem>>) -> (i32, i32) {
    %c0_i32 = arith.constant 0 : i32
    return %arg0, %arg1 : i32, i32
  }
  func.func @transform_2(%arg0: i32, %arg1: i32, %arg2: memref<1xi32, #tpu.memory_space<smem>>) -> (i32, i32) {
    %c0_i32 = arith.constant 0 : i32
    return %arg0, %arg1 : i32, i32
  }
}

</mosaic_0001>

<llo_original>
// kernel: tpu_custom_call.1
$region0: #{tpu_custom_call.1}
  #allocation0 [shape = 'u32[]', space=smem, size = 0x4, offset = 0x4, fixed_abs, tag = 'smem constant byte address 0x4 - core index']
  #allocation1 [shape = 'u32[72,128]{1,0:T(1,128)}', space=vmem, size = 0x9000, scoped, tag = 'internal scratch']
  #allocation2 [shape = 's32[1]{0}', space=sflag, size = 0x4, scoped, tag = 'scoped memory for tpu_custom_call.1']
  #allocation3 [shape = 's32[1]{0:T(128)S(6)}', space=smem, size = 0x200, scoped, tag = 'prefetched SMEM operand 0']
  %s0 = inlined_call_operand.<no memory space> [shape: s32[1], index: 0, kind: input, shape index: {}]
  %s1 = inlined_call_operand.hbm [shape: f32[64,64], index: 1, kind: input, shape index: {}, may-alias: {1,3}]
  %s2 = inlined_call_operand.vmem [shape: f32[128,64], index: 2, kind: input, shape index: {}]
  %s3 = inlined_call_operand.hbm [shape: f32[64,64], index: 3, kind: output, shape index: {}, may-alias: {1,3}]
  %s4 = sld [smem:[#allocation0]]
  $region45: #{tpu_custom_call.1} parent=0
    _
  %s6 = ssub.s32 1, %s4
  %s7 = scalar_select 0, %s6, %s4
  %8 = sst [smem:[#allocation3]] %s0
  $region1: #{tpu_custom_call.1} parent=0
    #allocation4 [shape = 'u8[16384]{0}', space=vmem, size = 0x4000, scoped, tag = 'input window, operand 1']
    #allocation5 [shape = 's32[2]{0}', space=sflag, size = 0x8, scoped, tag = 'scoped memory for tpu_custom_call.1']
    #allocation6 [shape = 's32[2]{0}', space=sflag, size = 0x8, scoped, tag = 'scoped memory for tpu_custom_call.1']
    #allocation7 [shape = 'u8[16384]{0}', space=vmem, size = 0x4000, scoped, tag = 'output window, operand 0']
    %9 = vsyncpa [#allocation5], 0
    %s10 = scalar_lea.sflag [#allocation5], 1
    %11 = vsyncpa %s10, 0
    %12 = vsyncpa [#allocation6], 0
    %s13 = scalar_lea.sflag [#allocation6], 1
    %14 = vsyncpa %s13, 0
    loop: start=0, step=1, limit=6
    $region2: #{tpu_custom_call.1} parent=1 // loop_pre_header
      _
    $region3: #{tpu_custom_call.1} parent=1 // loop_header
      %s16 = sphi 0, %s20
      %p17 = scmp.ge.s32.totalorder %s16, 6
      %s23 = sphi 0, %s35
      %s24 = sphi 0, %s31
      %s25 = sphi 0, %s23
      %s26 = sphi 0, %s24
      %s27 = sphi 0, %s25
      %s28 = sphi 0, %s26
      %s40 = sphi 0, %s42
      %s43 = sphi 0, %s40
      %s44 = sphi 0, %s43
      %s60 = sphi 0, %s44
      %s68 = sphi 0, %s70
      %s71 = sphi 0, %s68
      %s72 = sphi 0, %s71
      %s88 = sphi 0, %s72
      %s96 = sphi 0, %s98
      %s99 = sphi 0, %s96
      %s100 = sphi 0, %s99
      %s116 = sphi 0, %s100
    $region4: #{tpu_custom_call.1} parent=1 // loop_header_branch
      %19 = sbr.rel (%p17) target = $region8
    $region5: #{tpu_custom_call.1} parent=1 // loop_body
      %s21 = ssub.s32 %s16, 1
      %s22 = ssub.s32 %s16, 2
      %s29 = sadd.s32 1, %s24
      %p30 = scmp.ge.s32.totalorder %s29, 1
      %s31 = scalar_select %p30, 0, %s29
      %s32 = sadd.s32 1, %s23
      %s33 = scalar_select %p30, %s32, %s23
      %p34 = scmp.ge.s32.totalorder %s33, 4
      %s35 = scalar_select %p34, 0, %s33
      %s36 = ssub.s32 %s23, %s35
      %s37 = ssub.s32 %s24, %s31
      %s38 = sor.u32 %s36, %s37
      %p39 = scmp.eq.s32.totalorder %s38, 0
      %s41 = sadd.s32 %s40, 1
      %s42 = scalar_select %p39, %s40, %s41
      %p45 = pneg %p39
      %p46 = scmp.eq.s32.totalorder %s16, 3
      %p47 = por %p45, %p46
      %p48 = scmp.ne.s32.totalorder %s40, %s43
      %p49 = scmp.eq.s32.totalorder %s16, 0
      %p50 = por %p48, %p49
      %p51 = scmp.ne.s32.totalorder %s40, %s43
      %p52 = scmp.eq.s32.totalorder %s21, 3
      %p53 = por %p51, %p52
      %p54 = scmp.ne.s32.totalorder %s43, %s44
      %p55 = scmp.eq.s32.totalorder %s21, 0
      %p56 = por %p54, %p55
      %p57 = scmp.ne.s32.totalorder %s43, %s44
      %p58 = scmp.eq.s32.totalorder %s22, 3
      %p59 = por %p57, %p58
      %p61 = scmp.ne.s32.totalorder %s44, %s60
      %p62 = scmp.eq.s32.totalorder %s22, 0
      %p63 = por %p61, %p62
      %s64 = ssub.s32 %s23, %s35
      %s65 = ssub.s32 %s24, %s31
      %s66 = sor.u32 %s64, %s65
      %p67 = scmp.eq.s32.totalorder %s66, 0
      %s69 = sadd.s32 %s68, 1
      %s70 = scalar_select %p67, %s68, %s69
      %p73 = pneg %p67
      %p74 = scmp.eq.s32.totalorder %s16, 3
      %p75 = por %p73, %p74
      %p76 = scmp.ne.s32.totalorder %s68, %s71
      %p77 = scmp.eq.s32.totalorder %s16, 0
      %p78 = por %p76, %p77
      %p79 = scmp.ne.s32.totalorder %s68, %s71
      %p80 = scmp.eq.s32.totalorder %s21, 3
      %p81 = por %p79, %p80
      %p82 = scmp.ne.s32.totalorder %s71, %s72
      %p83 = scmp.eq.s32.totalorder %s21, 0
      %p84 = por %p82, %p83
      %p85 = scmp.ne.s32.totalorder %s71, %s72
      %p86 = scmp.eq.s32.totalorder %s22, 3
      %p87 = por %p85, %p86
      %p89 = scmp.ne.s32.totalorder %s72, %s88
      %p90 = scmp.eq.s32.totalorder %s22, 0
      %p91 = por %p89, %p90
      %s92 = ssub.s32 %s23, %s35
      %s93 = ssub.s32 %s24, %s31
      %s94 = sor.u32 %s92, %s93
      %p95 = scmp.eq.s32.totalorder %s94, 0
      %s97 = sadd.s32 %s96, 1
      %s98 = scalar_select %p95, %s96, %s97
      %p101 = pneg %p95
      %p102 = scmp.eq.s32.totalorder %s16, 3
      %p103 = por %p101, %p102
      %p104 = scmp.ne.s32.totalorder %s96, %s99
      %p105 = scmp.eq.s32.totalorder %s16, 0
      %p106 = por %p104, %p105
      %p107 = scmp.ne.s32.totalorder %s96, %s99
      %p108 = scmp.eq.s32.totalorder %s21, 3
      %p109 = por %p107, %p108
      %p110 = scmp.ne.s32.totalorder %s99, %s100
      %p111 = scmp.eq.s32.totalorder %s21, 0
      %p112 = por %p110, %p111
      %p113 = scmp.ne.s32.totalorder %s99, %s100
      %p114 = scmp.eq.s32.totalorder %s22, 3
      %p115 = por %p113, %p114
      %p117 = scmp.ne.s32.totalorder %s100, %s116
      %p118 = scmp.eq.s32.totalorder %s22, 0
      %p119 = por %p117, %p118
      %p120 = scmp.le.s32.totalorder 1, %s16
      %p121 = scmp.lt.s32.totalorder %s16, 5
      %p122 = pnand %p120, %p121
      %p123 = pneg %p122
      // Predicated region
      $region9: #{tpu_custom_call.1} parent=5 // pred_check
        _
      $region10: #{tpu_custom_call.1} parent=5 // pred_check_branch
        %125 = sbr.rel (%p122) target = $region12
      $region11: #{tpu_custom_call.1} parent=5 // pred_region
        %s126 = ssub.s32 %s16, 1
      $region12: #{tpu_custom_call.1} parent=5 // pred_fallthru
        _
      %p127 = scmp.lt.s32.totalorder %s16, 4
      // Predicated region
      $region13: #{tpu_custom_call.1} parent=5 // pred_check
        %p128 = pneg %p127
      $region14: #{tpu_custom_call.1} parent=5 // pred_check_branch
        %130 = sbr.rel (%p128) target = $region16
      $region15: #{tpu_custom_call.1} parent=5 // pred_region
        // Predicated region
        $region17: #{tpu_custom_call.1} parent=15 // pred_check
          %p131 = pneg %p50
        $region18: #{tpu_custom_call.1} parent=15 // pred_check_branch
          %133 = sbr.rel (%p131) target = $region20
        $region19: #{tpu_custom_call.1} parent=15 // pred_region
          %s134 = sand.u32 %s40, 1
          %s135 = scalar_lea.sflag [#allocation5], %s134
          %s136 = sand.u32 %s40, 1
          %s137 = smul.addr %s136, 16
          %s138 = scalar_lea.vmem [#allocation4], %s137
          %s139 = smul.u32 2, %s23
          %141 = vsyncadd %s135, 0
          %s142 = sadd.s32 %s24, %s139
          %s143 = smul.addr %s142, 8
          %s144 = scalar_lea.hbm %s1, %s143
          %s145 = sshll.u32 %s144, 4
          %s146 = int_to_ptr.hbm [resolvable:$true] %s145
          %s147 = sshll.u32 %s138, 4
          %s148 = int_to_ptr.vmem [resolvable:$true] %s147
          %153 = dma.hbm_to_vmem [thread:$0]  %s146, 256, %s148, %s135, 128, 128, 8
        $region20: #{tpu_custom_call.1} parent=15 // pred_fallthru
          _
        // Predicated region
        $region21: #{tpu_custom_call.1} parent=15 // pred_check
          %p154 = pneg %p78
        $region22: #{tpu_custom_call.1} parent=15 // pred_check_branch
          %156 = sbr.rel (%p154) target = $region24
        $region23: #{tpu_custom_call.1} parent=15 // pred_region
          %s157 = smul.u32 2, %s23
          %p158 = scmp.lt.s32.totalorder %s157, 15
          %s159 = scalar_select %p158, %s157, 15
          %p160 = scmp.lt.s32.totalorder %s24, 0
          %s161 = scalar_select %p160, %s24, 0
          %s162 = sadd.s32 %s161, %s159
          %s163 = smul.addr %s162, 8
          %s164 = scalar_lea.vmem %s2, %s163
          %s165 = smul.u32 2, %s23
        $region24: #{tpu_custom_call.1} parent=15 // pred_fallthru
          _
      $region16: #{tpu_custom_call.1} parent=5 // pred_fallthru
        _
      %p166 = scmp.le.s32.totalorder 1, %s16
      %p167 = scmp.lt.s32.totalorder %s16, 5
      %p168 = pnand %p166, %p167
      %p169 = pneg %p168
      // Predicated region
      $region25: #{tpu_custom_call.1} parent=5 // pred_check
        _
      $region26: #{tpu_custom_call.1} parent=5 // pred_check_branch
        %171 = sbr.rel (%p168) target = $region28
      $region27: #{tpu_custom_call.1} parent=5 // pred_region
        %s172 = ssub.s32 %s16, 1
        %s173 = sand.u32 %s43, 1
        %s174 = scalar_lea.sflag [#allocation5], %s173
        %s175 = sand.u32 %s43, 1
        %s176 = smul.addr %s175, 16
        %s177 = scalar_lea.vmem [#allocation4], %s176
        // Predicated region
        $region29: #{tpu_custom_call.1} parent=27 // pred_check
          %p178 = pneg %p56
        $region30: #{tpu_custom_call.1} parent=27 // pred_check_branch
          %180 = sbr.rel (%p178) target = $region32
        $region31: #{tpu_custom_call.1} parent=27 // pred_region
          %182 = dma.done %s174, 256
        $region32: #{tpu_custom_call.1} parent=27 // pred_fallthru
          _
        %s183 = sand.u32 %s43, 1
        %s184 = scalar_lea.sflag [#allocation5], %s183
        %s185 = sand.u32 %s43, 1
        %s186 = smul.addr %s185, 16
        %s187 = scalar_lea.vmem [#allocation4], %s186
        %p188 = pneg %p56
        %p189 = pneg %p53
        %s190 = smul.u32 2, %s25
        %p191 = scmp.lt.s32.totalorder %s190, 15
        %s192 = scalar_select %p191, %s190, 15
        %p193 = scmp.lt.s32.totalorder %s26, 0
        %s194 = scalar_select %p193, %s26, 0
        %s195 = sadd.s32 %s194, %s192
        %s196 = smul.addr %s195, 8
        %s197 = scalar_lea.vmem %s2, %s196
        %p198 = pneg %p84
        %p199 = pneg %p81
        %p200 = pneg %p112
        %p201 = pneg %p109
        %s202 = sand.u32 %s99, 1
        %s203 = scalar_lea.sflag [#allocation6], %s202
        %s204 = sand.u32 %s99, 1
        %s205 = smul.addr %s204, 16
        %s206 = scalar_lea.vmem [#allocation7], %s205
        %s207 = smul.u32 2, %s25
        %s208 = smul.u32 2, %s25
        %p209 = scmp.lt.s32.totalorder %s208, 15
        %s210 = scalar_select %p209, %s208, 15
        %p211 = scmp.lt.s32.totalorder %s26, 0
        %s212 = scalar_select %p211, %s26, 0
        %s213 = sadd.s32 %s212, %s210
        %s214 = smul.addr %s213, 8
        %s215 = scalar_lea.vmem %s2, %s214
        %s216 = smul.u32 2, %s25
        %s217 = smul.u32 2, %s25
        %v218 = vld [vmem:[%s177] sm:$0xff]
        %v219 = vld [vmem:[%s177 + $0x8] sm:$0xff]
        %v220 = vld [vmem:[%s215] sm:$0xff]
        %v221 = vld [vmem:[%s215 + $0x8] sm:$0xff]
        %v222 = vadd.f32 %v218, %v220
        %v223 = vadd.f32 %v219, %v221
        %vm224 = vcmask 523264
        %225 = vst.msk [vmem:[%s206] sm:$0xff] %vm224, %v222
        %226 = vst.msk [vmem:[%s206 + $0x8] sm:$0xff] %vm224, %v223
        %s227 = sand.u32 %s99, 1
        %s228 = scalar_lea.sflag [#allocation6], %s227
        %s229 = sand.u32 %s99, 1
        %s230 = smul.addr %s229, 16
        %s231 = scalar_lea.vmem [#allocation7], %s230
        // Predicated region
        $region33: #{tpu_custom_call.1} parent=27 // pred_check
          %p232 = pneg %p109
        $region34: #{tpu_custom_call.1} parent=27 // pred_check_branch
          %234 = sbr.rel (%p232) target = $region36
        $region35: #{tpu_custom_call.1} parent=27 // pred_region
          %s235 = smul.u32 2, %s25
          %237 = vsyncadd %s228, 0
          %s238 = sadd.s32 %s26, %s235
          %s239 = smul.addr %s238, 8
          %s240 = scalar_lea.hbm %s3, %s239
          %s241 = sshll.u32 %s231, 4
          %s242 = int_to_ptr.vmem [resolvable:$true] %s241
          %s243 = sshll.u32 %s240, 4
          %s244 = int_to_ptr.hbm [resolvable:$true] %s243
          %249 = dma.vmem_to_hbm [thread:$0]  %s242, 256, %s244, %s228, 128, 128, 8
        $region36: #{tpu_custom_call.1} parent=27 // pred_fallthru
          _
      $region28: #{tpu_custom_call.1} parent=5 // pred_fallthru
        _
      %p250 = scmp.le.s32.totalorder 2, %s16
      // Predicated region
      $region37: #{tpu_custom_call.1} parent=5 // pred_check
        %p251 = pneg %p250
      $region38: #{tpu_custom_call.1} parent=5 // pred_check_branch
        %253 = sbr.rel (%p251) target = $region40
      $region39: #{tpu_custom_call.1} parent=5 // pred_region
        %s254 = ssub.s32 %s16, 2
        // Predicated region
        $region41: #{tpu_custom_call.1} parent=39 // pred_check
          %p255 = pneg %p115
        $region42: #{tpu_custom_call.1} parent=39 // pred_check_branch
          %257 = sbr.rel (%p255) target = $region44
        $region43: #{tpu_custom_call.1} parent=39 // pred_region
          %s258 = sand.u32 %s100, 1
          %s259 = scalar_lea.sflag [#allocation6], %s258
          %s260 = sand.u32 %s100, 1
          %s261 = smul.addr %s260, 16
          %s262 = scalar_lea.vmem [#allocation7], %s261
          %264 = dma.done %s259, 256
        $region44: #{tpu_custom_call.1} parent=39 // pred_fallthru
          _
      $region40: #{tpu_custom_call.1} parent=5 // pred_fallthru
        _
    $region6: #{tpu_custom_call.1} parent=1 // loop_footer
      %s20 = sadd.s32 1, %s16
    $region7: #{tpu_custom_call.1} parent=1 // loop_footer_branch
      %15 = sbr.rel target = $region3
    $region8: #{tpu_custom_call.1} parent=1 // loop_exit
      _
    %265 = vsyncpa [#allocation5], 1
    %s266 = scalar_lea.sflag [#allocation5], 1
    %267 = vsyncpa %s266, 1
    %268 = vsyncpa [#allocation6], 1
    %s269 = scalar_lea.sflag [#allocation6], 1
    %270 = vsyncpa %s269, 1

</llo_original>
